<compile_context>
chip_gen: v7x
topology: tpu7x:2x2x1
jax: 0.10.0
libtpu: 0.0.40
codegen_flags: <defaults>
</compile_context>

<pallas_src>
import jax
import jax.numpy as jnp
from jax.experimental import pallas as pl
from jax.experimental.pallas import tpu as pltpu


# ----------------------------- Pallas kernel ------------------------------- #
def _jitter_kernel(code_ref, x_ref, o_ref):
    """code_ref: (Bb, T) or (Bb, 1, T) int32 in {0,1,2}; x_ref/o_ref: (Bb, Ic, T)."""
    x = x_ref[...]                                 # (Bb, Ic, T)
    s = code_ref[...]
    if s.ndim == 2:
        s = s[:, None, :]                          # (Bb, 1, T); where() broadcasts over Ic
    T = x.shape[-1]

    # Neighbour shifts along time.  Wrap-around / edge lanes are never selected
    # because s[..., 0] == s[..., T-1] == 1.  Consume x_prev before producing
    # x_next to keep vreg pressure down on large blocks.
    if T % 128 == 0:
        x_prev = pltpu.roll(x, shift=1, axis=2)          # XLU rotate (cheap slot)
    else:
        x_prev = jnp.concatenate([x[..., :1], x[..., :-1]], axis=-1)
    y = jnp.where(s == 0, x_prev, x)

    if T % 128 == 0:
        x_next = pltpu.roll(x, shift=T - 1, axis=2)      # roll by -1
    else:
        x_next = jnp.concatenate([x[..., 1:], x[..., -1:]], axis=-1)
    y = jnp.where(s == 2, x_next, y)

    o_ref[...] = y.astype(o_ref.dtype)


# ------------------------------ block sizing ------------------------------- #
def _vmem_capacity_bytes():
    try:
        return int(pltpu.get_tpu_info().vmem_capacity_bytes)
    except Exception:
        return 64 << 20                            # conservative: v7x per-TC VMEM


def _choose_blocks(B, I, T, itemsize, target_block_bytes,
                   min_grid_steps=4, small_total_bytes=1 << 20):
    """Pick (batch_tile, channel_tile).  The time axis is never tiled (the
    shift-based gather needs the full T per block).  The channel tile must be a
    multiple of 8 or equal I (second-minor dim of the x blocks)."""
    row = T * itemsize
    if B * I * row <= small_total_bytes:
        return B, I                                # one block: step overhead dominates

    # Channel tile: only split channels when one batch exceeds the target.
    if I * row <= target_block_bytes:
        ic = I
    else:
        ic = min(I, max(8, ((target_block_bytes // row) // 8) * 8))

    # Batch tile sized so one block is ~target_block_bytes.
    slab = ic * row
    bb = max(1, min(B, target_block_bytes // max(slab, 1)))

    # Keep >= min_grid_steps blocks so the DMA pipeline (prologue/epilogue) and
    # the v7x 2-TensorCore split have work to overlap.
    def n_steps(bb_, ic_):
        return ((B + bb_ - 1) // bb_) * ((I + ic_ - 1) // ic_)

    while n_steps(bb, ic) < min_grid_steps:
        if bb > 1:
            bb //= 2
        elif ic >= 16:
            ic = max(8, ((ic // 2) // 8) * 8)
        else:
            break
    return bb, ic


# --------------------------------- wrapper --------------------------------- #
def jitter_apply(x, codes, *, donate_x=False, validate=False):
    """y[b, :, t] = x[b, :, t - 1 + codes[b, t]].

    x: (B, I, T) float; codes: (B, T) int32 in {0,1,2} with
    codes[:, 0] == codes[:, -1] == 1 (required by the shift-based gather).
    """
    B, I, T = x.shape
    codes = codes.astype(jnp.int32)
    assert codes.shape == (B, T), "codes must have shape (B, T)"

    if validate:
        ok = bool(jnp.all((codes[:, 0] == 1) & (codes[:, -1] == 1)))
        if not ok:
            raise ValueError("Jitter codes must equal 1 at t=0 and t=T-1.")

    itemsize = jnp.dtype(x.dtype).itemsize
    vmem_cap = _vmem_capacity_bytes()
    target_block_bytes = min(8 << 20, max(2 << 20, vmem_cap // 10))
    bb, ic = _choose_blocks(B, I, T, itemsize, target_block_bytes)

    # The codes' batch tile is the second-minor dim of a 2-D block, so it must
    # be a multiple of 8 or the full batch.  Snap down when possible; otherwise
    # fall back to the sublane-padded (B, 1, T) layout (HBM traffic unchanged,
    # only the small codes VMEM buffer grows 8x).
    if bb != B and bb >= 8:
        bb = (bb // 8) * 8
    use_2d_codes = (bb == B) or (bb % 8 == 0)
    if use_2d_codes:
        codes_arg = codes
        codes_spec = pl.BlockSpec((bb, T), lambda b, c: (b, 0))
        code_block_bytes = bb * T * 4
    else:
        codes_arg = codes.reshape(B, 1, T)
        codes_spec = pl.BlockSpec((bb, 1, T), lambda b, c: (b, 0, 0))
        code_block_bytes = bb * 8 * T * 4

    grid = (pl.cdiv(B, bb), pl.cdiv(I, ic))
    block_x_bytes = bb * ic * T * itemsize

    # VMEM budget: double-buffered in + out x blocks (4x), block-sized in-kernel
    # temporaries (x_prev / x_next / y ~ 3x), double-buffered codes, headroom;
    # clamped to ~90% of physical VMEM for this TPU generation.
    need = 7 * block_x_bytes + 2 * code_block_bytes + (2 << 20)
    vmem_limit = int(min(max(need, 32 << 20), int(vmem_cap * 0.9)))

    extra = {}
    if donate_x:
        # x is positional input 1 (after codes); in/out index maps are identical
        # per grid step and blocks are disjoint, so aliasing is safe.
        extra["input_output_aliases"] = {1: 0}

    bytes_accessed = 2 * B * I * T * itemsize + B * T * 4
    return pl.pallas_call(
        _jitter_kernel,
        out_shape=jax.ShapeDtypeStruct((B, I, T), x.dtype),
        grid_spec=pltpu.PrefetchScalarGridSpec(
            num_scalar_prefetch=0,
            grid=grid,
            in_specs=[
                codes_spec,                                          # jitter codes
                pl.BlockSpec((bb, ic, T), lambda b, c: (b, c, 0)),   # input features
            ],
            out_specs=pl.BlockSpec((bb, ic, T), lambda b, c: (b, c, 0)),
        ),
        compiler_params=pltpu.CompilerParams(
            dimension_semantics=("parallel", "parallel"),
            vmem_limit_bytes=vmem_limit),
        cost_estimate=pl.CostEstimate(flops=0, transcendentals=0,
                                      bytes_accessed=bytes_accessed),
        **extra,
    )(codes_arg, x)


# ------------------- Markov-chain jitter code generation ------------------- #
# Mirrors Jitter.__init__ + gen_mask: conditional table indexed
# tmp[s_{t-1}, s_{t-2}] with tmp[2][1] renormalized to forbid code 0.
def make_transition_table(replace_prob):
    p = float(replace_prob)
    s = 1.0 - 2.0 * p
    tmp = jnp.tile(jnp.array([p, s, p], dtype=jnp.float32), (3, 3, 1))   # (3, 3, 3)
    tmp = tmp.at[2, 1].set(
        jnp.array([0.0, s / (p + s), p / (p + s)], dtype=jnp.float32))
    return tmp


def gen_jitter_codes(key, n_batch, n_time, table):
    """(n_batch, n_time) int32 codes; code[b, t] selects source index
    t - 1 + code[b, t].  First/last positions forced to 1 (stay); interior
    sampled from the 2nd-order Markov chain seeded with two leading 1s."""
    n_inner = n_time - 2

    def step(carry, k):
        prev2, prev1 = carry                       # each (B,)
        probs = table[prev1, prev2]                # (B, 3)
        samp = jax.random.categorical(k, jnp.log(probs), axis=-1).astype(jnp.int32)
        return (prev1, samp), samp

    init = (jnp.ones((n_batch,), jnp.int32), jnp.ones((n_batch,), jnp.int32))
    keys = jax.random.split(key, n_inner)
    _, samples = jax.lax.scan(step, init, keys)    # (n_inner, B)
    samples = samples.T                            # (B, n_inner)
    ones = jnp.ones((n_batch, 1), jnp.int32)
    return jnp.concatenate([ones, samples, ones], axis=1)


# --------------------------- plain-JAX reference --------------------------- #
def jitter_reference(x, codes):
    B, I, T = x.shape
    idx = jnp.arange(T, dtype=jnp.int32)[None, :] - 1 + codes     # (B, T)
    idx = jnp.broadcast_to(idx[:, None, :], (B, I, T))
    return jnp.take_along_axis(x, idx, axis=2)


if __name__ == "__main__":
    key = jax.random.PRNGKey(0)
    replace_prob = 0.12
    table = make_transition_table(replace_prob)

    # Test 1: small shape consistent with the module's (B, I, T) input.
    k1x, k1c, k2x, k2c = jax.random.split(key, 4)
    B, I, T = 2, 8, 128
    x = jax.random.normal(k1x, (B, I, T), dtype=jnp.float32)
    codes = gen_jitter_codes(k1c, B, T, table)
    y = jax.block_until_ready(jitter_apply(x, codes, validate=True))
    assert y.shape == x.shape and y.dtype == x.dtype
    assert bool(jnp.array_equal(y, jitter_reference(x, codes))), "mismatch (test 1)"

    # Test 2: larger shape that exercises the multi-block batch grid.
    B2, I2, T2 = 16, 64, 512
    x2 = jax.random.normal(k2x, (B2, I2, T2), dtype=jnp.float32)
    codes2 = gen_jitter_codes(k2c, B2, T2, table)
    y2 = jax.block_until_ready(jitter_apply(x2, codes2))
    assert bool(jnp.array_equal(y2, jitter_reference(x2, codes2))), "mismatch (test 2)"

    print("KERNEL_OK")
</pallas_src>

<mosaic_0001>
module attributes {stable_mosaic.version = 11 : i64} {
  func.func @_jitter_kernel(%arg0: i32, %arg1: i32, %arg2: memref<2x128xi32, #tpu.memory_space<vmem>>, %arg3: memref<2x8x128xf32, #tpu.memory_space<vmem>>, %arg4: memref<2x8x128xf32, #tpu.memory_space<vmem>>) attributes {dimension_semantics = [#tpu.dimension_semantics<parallel>, #tpu.dimension_semantics<parallel>], iteration_bounds = array<i64: 1, 1>, scalar_prefetch = 0 : i64, scratch_operands = 0 : i64, tpu.core_type = #tpu.core_type<tc>, window_params = [{transform_indices = @transform_0, window_bounds = array<i64: 2, 128>}, {transform_indices = @transform_1, window_bounds = array<i64: 2, 8, 128>}, {transform_indices = @transform_2, window_bounds = array<i64: 2, 8, 128>}]} {
    %c0 = arith.constant 0 : index
    %c0_0 = arith.constant 0 : index
    %c0_1 = arith.constant 0 : index
    %0 = vector.load %arg3[%c0, %c0_0, %c0_1] : memref<2x8x128xf32, #tpu.memory_space<vmem>>, vector<2x8x128xf32>
    %c0_2 = arith.constant 0 : index
    %c0_3 = arith.constant 0 : index
    %1 = vector.load %arg2[%c0_2, %c0_3] : memref<2x128xi32, #tpu.memory_space<vmem>>, vector<2x128xi32>
    %2 = vector.shape_cast %1 : vector<2x128xi32> to vector<2x1x128xi32>
    %c1_i32 = arith.constant 1 : i32
    %3 = tpu.dynamic_rotate %0 by %c1_i32 dim 2 : vector<2x8x128xf32>, i32 -> vector<2x8x128xf32>
    %c0_i32 = arith.constant 0 : i32
    %4 = vector.broadcast %c0_i32 : i32 to vector<2x1x128xi32>
    %5 = arith.cmpi eq, %2, %4 : vector<2x1x128xi32>
    %6 = vector.shape_cast %5 : vector<2x1x128xi1> to vector<2x1x128xi1>
    %7 = vector.broadcast %6 : vector<2x1x128xi1> to vector<2x8x128xi1>
    %8 = arith.select %7, %3, %0 : vector<2x8x128xi1>, vector<2x8x128xf32>
    %c127_i32 = arith.constant 127 : i32
    %9 = tpu.dynamic_rotate %0 by %c127_i32 dim 2 : vector<2x8x128xf32>, i32 -> vector<2x8x128xf32>
    %c2_i32 = arith.constant 2 : i32
    %10 = vector.broadcast %c2_i32 : i32 to vector<2x1x128xi32>
    %11 = arith.cmpi eq, %2, %10 : vector<2x1x128xi32>
    %12 = vector.shape_cast %11 : vector<2x1x128xi1> to vector<2x1x128xi1>
    %13 = vector.broadcast %12 : vector<2x1x128xi1> to vector<2x8x128xi1>
    %14 = arith.select %13, %9, %8 : vector<2x8x128xi1>, vector<2x8x128xf32>
    %c0_4 = arith.constant 0 : index
    %c0_5 = arith.constant 0 : index
    %c0_6 = arith.constant 0 : index
    %15 = vector.load %arg4[%c0_4, %c0_5, %c0_6] : memref<2x8x128xf32, #tpu.memory_space<vmem>>, vector<2x8x128xf32>
    tpu.vector_store %arg4[%c0_4, %c0_5, %c0_6], %14 {strides = array<i32>} : memref<2x8x128xf32, #tpu.memory_space<vmem>>, vector<2x8x128xf32>,
    return
  }
  func.func @transform_0(%arg0: i32, %arg1: i32) -> (i32, i32) {
    %c0_i32 = arith.constant 0 : i32
    %c0_i32_0 = arith.constant 0 : i32
    return %arg0, %c0_i32 : i32, i32
  }
  func.func @transform_1(%arg0: i32, %arg1: i32) -> (i32, i32, i32) {
    %c0_i32 = arith.constant 0 : i32
    %c0_i32_0 = arith.constant 0 : i32
    return %arg0, %arg1, %c0_i32 : i32, i32, i32
  }
  func.func @transform_2(%arg0: i32, %arg1: i32) -> (i32, i32, i32) {
    %c0_i32 = arith.constant 0 : i32
    %c0_i32_0 = arith.constant 0 : i32
    return %arg0, %arg1, %c0_i32 : i32, i32, i32
  }
}

</mosaic_0001>

<llo_original>
// kernel: tpu_custom_call.1
$region0: #{tpu_custom_call.1}
  #allocation0 [shape = 'u32[]', space=smem, size = 0x4, offset = 0x4, fixed_abs, tag = 'smem constant byte address 0x4 - core index']
  #allocation1 [shape = 'u32[144,128]{1,0:T(1,128)}', space=vmem, size = 0x12000, scoped, tag = 'internal scratch']
  %s0 = inlined_call_operand.hbm [shape: s32[2,128], index: 0, kind: input, shape index: {}]
  %s1 = inlined_call_operand.hbm [shape: f32[2,8,128], index: 1, kind: input, shape index: {}]
  %s2 = inlined_call_operand.hbm [shape: f32[2,8,128], index: 2, kind: output, shape index: {}]
  %s3 = sld [smem:[#allocation0]]
  $region26: #{tpu_custom_call.1} parent=0
    _
  %s5 = ssub.s32 1, %s3
  %s6 = scalar_select 0, %s5, %s3
  $region1: #{tpu_custom_call.1} parent=0
    #allocation2 [shape = 'u8[1024]{0}', space=vmem, size = 0x400, scoped, tag = 'input window, operand 0, single buffered']
    #allocation3 [shape = 's32[1]{0}', space=sflag, size = 0x4, scoped, tag = 'scoped memory for tpu_custom_call.1']
    #allocation4 [shape = 's32[1]{0}', space=sflag, size = 0x4, scoped, tag = 'scoped memory for tpu_custom_call.1']
    #allocation5 [shape = 'u8[8192]{0}', space=vmem, size = 0x2000, scoped, tag = 'input window, operand 1, single buffered']
    #allocation6 [shape = 's32[1]{0}', space=sflag, size = 0x4, scoped, tag = 'scoped memory for tpu_custom_call.1']
    #allocation7 [shape = 'u8[8192]{0}', space=vmem, size = 0x2000, scoped, tag = 'output window, operand 0, single buffered']
    %7 = vsyncpa [#allocation3], 0
    %8 = vsyncpa [#allocation6], 0
    %9 = vsyncpa [#allocation4], 0
    // Predicated region
    $region2: #{tpu_custom_call.1} parent=1 // pred_check
      _
    $region3: #{tpu_custom_call.1} parent=1 // pred_check_branch
      %11 = sbr.rel (0) target = $region5
    $region4: #{tpu_custom_call.1} parent=1 // pred_region
      %s13 = ssub.s32 32, 32
      %14 = vsyncadd [#allocation3], %s13
      %s16 = sshll.u32 [#allocation2], 4
      %s17 = int_to_ptr.vmem [resolvable:$true] %s16
      %19 = dma.hbm_to_vmem [thread:$0]  %s0, 32, %s17, [#allocation3]
    $region5: #{tpu_custom_call.1} parent=1 // pred_fallthru
      _
    // Predicated region
    $region6: #{tpu_custom_call.1} parent=1 // pred_check
      _
    $region7: #{tpu_custom_call.1} parent=1 // pred_check_branch
      %21 = sbr.rel (0) target = $region9
    $region8: #{tpu_custom_call.1} parent=1 // pred_region
      %s23 = ssub.s32 256, 256
      %24 = vsyncadd [#allocation6], %s23
      %s25 = sshll.u32 [#allocation5], 4
      %s26 = int_to_ptr.vmem [resolvable:$true] %s25
      %31 = dma.hbm_to_vmem [thread:$0]  %s1, 256, %s26, [#allocation6], 128, 128, 8
    $region9: #{tpu_custom_call.1} parent=1 // pred_fallthru
      _
    // Predicated region
    $region10: #{tpu_custom_call.1} parent=1 // pred_check
      _
    $region11: #{tpu_custom_call.1} parent=1 // pred_check_branch
      %33 = sbr.rel (0) target = $region13
    $region12: #{tpu_custom_call.1} parent=1 // pred_region
      %34 = dma.done [#allocation3], 32
    $region13: #{tpu_custom_call.1} parent=1 // pred_fallthru
      _
    // Predicated region
    $region14: #{tpu_custom_call.1} parent=1 // pred_check
      _
    $region15: #{tpu_custom_call.1} parent=1 // pred_check_branch
      %36 = sbr.rel (0) target = $region17
    $region16: #{tpu_custom_call.1} parent=1 // pred_region
      %37 = dma.done [#allocation6], 256
    $region17: #{tpu_custom_call.1} parent=1 // pred_fallthru
      _
    %v38 = vld [vmem:[#allocation5] sm:$0xff]
    %v39 = vld [vmem:[#allocation5 + $0x8] sm:$0xff]
    %v40 = vld [vmem:[#allocation2] sm:$0x3]
    %v42 = vunpack.c.l.s4 1966171168
    %v43 = vunpack.c.0.s8 %v42
    %v44 = vlaneseq
    %v45 = vshrl.u32 %v44, 7
    %v46 = vsub.s32 %v43, %v45
    %v47 = vrot.slane %v40, %v46
    %v48 = vcombine.high %v47, %v47
    %v50 = vunpack.c.l.s4 1966171168
    %v51 = vunpack.c.0.s8 %v50
    %v52 = vlaneseq
    %v53 = vshrl.u32 %v52, 7
    %v54 = vsub.s32 %v51, %v53
    %v55 = vrot.slane %v47, %v54
    %v57 = vunpack.c.l.s4 1966171168
    %v58 = vunpack.c.0.s8 %v57
    %v59 = vlaneseq
    %v60 = vshrl.u32 %v59, 7
    %v61 = vsub.s32 %v58, %v60
    %v62 = vrot.slane %v48, %v61
    %63 = vrot.lane.b32.xlu0 %v38, 1
    %v64 = vpop.permute.xlu0 %63
    %65 = vrot.lane.b32.xlu0 %v39, 1
    %v66 = vpop.permute.xlu0 %65
    %vm67 = vcmp.eq.s32.totalorder %v55, 0
    %vm68 = vcmp.eq.s32.totalorder %v62, 0
    %v69 = vsel %vm67, 1, 0
    %v70 = vsel %vm68, 1, 0
    %v71 = vlaneseq
    %v72 = vshrl.u32 %v71, 7
    %v73 = vsub.s32 0, %v72
    %v74 = vrot.slane %v69, %v73
    %v75 = vlaneseq
    %v76 = vshrl.u32 %v75, 7
    %v77 = vsub.s32 0, %v76
    %v78 = vrot.slane %v70, %v77
    %vm79 = vcmp.eq.s32.totalorder %v74, 1
    %vm80 = vcmp.eq.s32.totalorder %v78, 1
    %v81 = vsel %vm79, %v64, %v38
    %v82 = vsel %vm80, %v66, %v39
    %83 = vrot.lane.b32.xlu0 %v38, 127
    %v84 = vpop.permute.xlu0 %83
    %85 = vrot.lane.b32.xlu0 %v39, 127
    %v86 = vpop.permute.xlu0 %85
    %vm87 = vcmp.eq.s32.totalorder %v55, 2
    %vm88 = vcmp.eq.s32.totalorder %v62, 2
    %v89 = vsel %vm87, 1, 0
    %v90 = vsel %vm88, 1, 0
    %v91 = vlaneseq
    %v92 = vshrl.u32 %v91, 7
    %v93 = vsub.s32 0, %v92
    %v94 = vrot.slane %v89, %v93
    %v95 = vlaneseq
    %v96 = vshrl.u32 %v95, 7
    %v97 = vsub.s32 0, %v96
    %v98 = vrot.slane %v90, %v97
    %vm99 = vcmp.eq.s32.totalorder %v94, 1
    %vm100 = vcmp.eq.s32.totalorder %v98, 1
    %v101 = vsel %vm99, %v84, %v81
    %v102 = vsel %vm100, %v86, %v82
    %103 = vst [vmem:[#allocation7] sm:$0xff] %v101
    %104 = vst [vmem:[#allocation7 + $0x8] sm:$0xff] %v102
    // Predicated region
    $region18: #{tpu_custom_call.1} parent=1 // pred_check
      _
    $region19: #{tpu_custom_call.1} parent=1 // pred_check_branch
      %106 = sbr.rel (0) target = $region21
    $region20: #{tpu_custom_call.1} parent=1 // pred_region
      %s108 = ssub.s32 256, 256
      %109 = vsyncadd [#allocation4], %s108
      %s110 = sshll.u32 [#allocation7], 4
      %s111 = int_to_ptr.vmem [resolvable:$true] %s110
      %116 = dma.vmem_to_hbm [thread:$0]  %s111, 256, %s2, [#allocation4], 128, 128, 8
    $region21: #{tpu_custom_call.1} parent=1 // pred_fallthru
      _
    // Predicated region
    $region22: #{tpu_custom_call.1} parent=1 // pred_check
      _
    $region23: #{tpu_custom_call.1} parent=1 // pred_check_branch
      %118 = sbr.rel (0) target = $region25
    $region24: #{tpu_custom_call.1} parent=1 // pred_region
      %119 = dma.done [#allocation4], 256
    $region25: #{tpu_custom_call.1} parent=1 // pred_fallthru
      _
    %120 = vsyncpa [#allocation3], 1
    %121 = vsyncpa [#allocation6], 1
    %122 = vsyncpa [#allocation4], 1

</llo_original>
